<compile_context>
chip_gen: v7x
topology: tpu7x:2x2x1
jax: 0.10.0
libtpu: 0.0.40
codegen_flags: <defaults>
</compile_context>

<pallas_src>
import functools

import jax
import jax.numpy as jnp
from jax.experimental import pallas as pl
from jax.experimental.pallas import tpu as pltpu


# Scoped-VMEM limit requested from the compiler.  48 MiB leaves headroom under
# v7x's 64 MiB physical VMEM and is comfortably below v5e/v6e's 128 MiB.
_VMEM_LIMIT_BYTES = 48 * 1024 * 1024
# Budget for the double-buffered (input + output) row tiles themselves.
_TILE_BUDGET_BYTES = 36 * 1024 * 1024
_MAX_BLOCK_ROWS = 1024


def _round_up(x: int, m: int) -> int:
    return ((x + m - 1) // m) * m


def _rmsnorm_kernel(x_ref, w_ref, o_ref, *, eps: float, inv_hidden: float):
    # x_ref: (block_rows, H_pad) tile; w_ref: (1, H_pad); o_ref: (block_rows, H_pad)
    x = x_ref[...].astype(jnp.float32)                      # hidden_states.float()
    # mean over the TRUE hidden size (zero padding contributes nothing to the sum)
    ms = jnp.sum(x * x, axis=-1, keepdims=True) * inv_hidden
    normed = x * jax.lax.rsqrt(ms + eps)                    # x * rsqrt(var + eps)
    # .type_as(hidden_states), then weight * (...) promotes like PyTorch
    normed = normed.astype(x_ref.dtype)
    o_ref[...] = (w_ref[...] * normed).astype(o_ref.dtype)


def rmsnorm(hidden_states: jax.Array, weight: jax.Array, eps: float = 1e-6,
            block_rows: int | None = None) -> jax.Array:
    """RMSNorm over the last axis, matching the PyTorch module semantics."""
    orig_shape = hidden_states.shape
    hidden = orig_shape[-1]

    # PyTorch promotion: weight(f32) * normed.type_as(x)
    out_dtype = jnp.promote_types(weight.dtype, hidden_states.dtype)

    x2d = hidden_states.reshape(-1, hidden)
    rows = x2d.shape[0]

    # Lane-dense hidden: pad the last dim to a multiple of 128 (unmasked stores).
    hidden_p = _round_up(hidden, 128)

    x_bytes = jnp.dtype(hidden_states.dtype).itemsize
    o_bytes = jnp.dtype(out_dtype).itemsize

    # Sublane packing: 8 rows/vreg for 32-bit, 16 for 16-bit, 32 for 8-bit.
    row_align = max(8, 32 // min(x_bytes, o_bytes))

    if block_rows is None:
        per_row_bytes = hidden_p * (x_bytes + o_bytes)
        # factor 2 = double-buffered pipeline for both the input and output tile
        max_rows = _TILE_BUDGET_BYTES // (2 * per_row_bytes)
        block_rows = max(row_align, (max_rows // row_align) * row_align)
        block_rows = min(block_rows, _MAX_BLOCK_ROWS)
        # never bigger than the (aligned) problem itself
        block_rows = min(block_rows, _round_up(rows, row_align))
    block_rows = _round_up(block_rows, row_align)

    # Prefer >= 2 grid steps so v7x's two TensorCores can both be used
    # (no-op on v5e/v6e which have a single TensorCore).
    if rows > 2 * row_align and _round_up(rows, block_rows) // block_rows < 2:
        block_rows = max(row_align, _round_up((rows + 1) // 2, row_align))

    rows_p = _round_up(rows, block_rows)
    pad_r = rows_p - rows
    pad_h = hidden_p - hidden

    if pad_r or pad_h:
        x2d = jnp.pad(x2d, ((0, pad_r), (0, pad_h)))
    w2d = weight.reshape(1, hidden)
    if pad_h:
        w2d = jnp.pad(w2d, ((0, 0), (0, pad_h)))

    grid = (rows_p // block_rows,)

    out = pl.pallas_call(
        functools.partial(_rmsnorm_kernel, eps=eps, inv_hidden=1.0 / hidden),
        out_shape=jax.ShapeDtypeStruct((rows_p, hidden_p), out_dtype),
        grid_spec=pltpu.PrefetchScalarGridSpec(
            num_scalar_prefetch=0,
            grid=grid,
            in_specs=[
                pl.BlockSpec((block_rows, hidden_p), lambda i: (i, 0)),
                pl.BlockSpec((1, hidden_p), lambda i: (0, 0)),
            ],
            out_specs=pl.BlockSpec((block_rows, hidden_p), lambda i: (i, 0)),
        ),
        compiler_params=pltpu.CompilerParams(
            dimension_semantics=("parallel",),
            vmem_limit_bytes=_VMEM_LIMIT_BYTES,
        ),
    )(x2d, w2d)

    if pad_r or pad_h:
        out = out[:rows, :hidden]
    return out.reshape(orig_shape)


if __name__ == "__main__":
    batch, seq, hidden = 2, 8, 32
    eps = 1e-6

    key = jax.random.PRNGKey(0)
    x = jax.random.normal(key, (batch, seq, hidden), dtype=jnp.float32)

    # deterministic parameter init (matches nn.Parameter(torch.ones(hidden)))
    weight = jnp.ones((hidden,), dtype=jnp.float32)

    out = rmsnorm(x, weight, eps=eps)
    out = jax.block_until_ready(out)

    # reference check in plain JAX (mirrors the PyTorch forward)
    xf = x.astype(jnp.float32)
    var = jnp.mean(xf * xf, axis=-1, keepdims=True)
    ref = weight * (xf * jax.lax.rsqrt(var + eps)).astype(x.dtype)
    assert out.shape == x.shape
    assert out.dtype == ref.dtype
    assert jnp.allclose(out, ref, atol=1e-5, rtol=1e-5)

    print("KERNEL_OK")
</pallas_src>

<mosaic_0001>
module attributes {stable_mosaic.version = 11 : i64} {
  func.func @_rmsnorm_kernel(%arg0: i32, %arg1: memref<16x128xf32, #tpu.memory_space<vmem>>, %arg2: memref<1x128xf32, #tpu.memory_space<vmem>>, %arg3: memref<16x128xf32, #tpu.memory_space<vmem>>) attributes {dimension_semantics = [#tpu.dimension_semantics<parallel>], iteration_bounds = array<i64: 1>, scalar_prefetch = 0 : i64, scratch_operands = 0 : i64, tpu.core_type = #tpu.core_type<tc>, window_params = [{transform_indices = @transform_0, window_bounds = array<i64: 16, 128>}, {pipeline_mode = #tpu.pipeline_mode<synchronous>, transform_indices = @transform_1, window_bounds = array<i64: 1, 128>}, {transform_indices = @transform_2, window_bounds = array<i64: 16, 128>}]} {
    %c0 = arith.constant 0 : index
    %c0_0 = arith.constant 0 : index
    %0 = vector.load %arg1[%c0, %c0_0] : memref<16x128xf32, #tpu.memory_space<vmem>>, vector<16x128xf32>
    %1 = arith.mulf %0, %0 : vector<16x128xf32>
    %cst = arith.constant dense<0.000000e+00> : vector<16xf32>
    %2 = vector.multi_reduction <add>, %1, %cst [1] : vector<16x128xf32> to vector<16xf32>
    %3 = vector.shape_cast %2 : vector<16xf32> to vector<16x1xf32>
    %cst_1 = arith.constant 3.125000e-02 : f32
    %4 = vector.broadcast %cst_1 : f32 to vector<16x1xf32>
    %5 = arith.mulf %3, %4 : vector<16x1xf32>
    %cst_2 = arith.constant 9.99999997E-7 : f32
    %6 = vector.broadcast %cst_2 : f32 to vector<16x1xf32>
    %7 = arith.addf %5, %6 : vector<16x1xf32>
    %8 = math.rsqrt %7 : vector<16x1xf32>
    %9 = vector.broadcast %8 : vector<16x1xf32> to vector<16x128xf32>
    %10 = arith.mulf %0, %9 : vector<16x128xf32>
    %c0_3 = arith.constant 0 : index
    %c0_4 = arith.constant 0 : index
    %11 = vector.load %arg2[%c0_3, %c0_4] : memref<1x128xf32, #tpu.memory_space<vmem>>, vector<1x128xf32>
    %12 = vector.broadcast %11 : vector<1x128xf32> to vector<16x128xf32>
    %13 = arith.mulf %12, %10 : vector<16x128xf32>
    %c0_5 = arith.constant 0 : index
    %c0_6 = arith.constant 0 : index
    %14 = vector.load %arg3[%c0_5, %c0_6] : memref<16x128xf32, #tpu.memory_space<vmem>>, vector<16x128xf32>
    tpu.vector_store %arg3[%c0_5, %c0_6], %13 {strides = array<i32>} : memref<16x128xf32, #tpu.memory_space<vmem>>, vector<16x128xf32>,
    return
  }
  func.func @transform_0(%arg0: i32) -> (i32, i32) {
    %c0_i32 = arith.constant 0 : i32
    %c0_i32_0 = arith.constant 0 : i32
    return %arg0, %c0_i32 : i32, i32
  }
  func.func @transform_1(%arg0: i32) -> (i32, i32) {
    %c0_i32 = arith.constant 0 : i32
    %c0_i32_0 = arith.constant 0 : i32
    %c0_i32_1 = arith.constant 0 : i32
    return %c0_i32, %c0_i32_0 : i32, i32
  }
  func.func @transform_2(%arg0: i32) -> (i32, i32) {
    %c0_i32 = arith.constant 0 : i32
    %c0_i32_0 = arith.constant 0 : i32
    return %arg0, %c0_i32 : i32, i32
  }
}

</mosaic_0001>

<llo_original>
// kernel: tpu_custom_call.1
$region0: #{tpu_custom_call.1}
  #allocation0 [shape = 'u32[]', space=smem, size = 0x4, offset = 0x4, fixed_abs, tag = 'smem constant byte address 0x4 - core index']
  #allocation1 [shape = 'u32[144,128]{1,0:T(1,128)}', space=vmem, size = 0x12000, scoped, tag = 'internal scratch']
  %s0 = inlined_call_operand.hbm [shape: f32[16,128], index: 0, kind: input, shape index: {}]
  %s1 = inlined_call_operand.vmem [shape: f32[1,128], index: 1, kind: input, shape index: {}]
  %s2 = inlined_call_operand.hbm [shape: f32[16,128], index: 2, kind: output, shape index: {}]
  %s3 = sld [smem:[#allocation0]]
  $region22: #{tpu_custom_call.1} parent=0
    _
  %s5 = ssub.s32 1, %s3
  %s6 = scalar_select 0, %s5, %s3
  $region1: #{tpu_custom_call.1} parent=0
    #allocation2 [shape = 'u8[8192]{0}', space=vmem, size = 0x2000, scoped, tag = 'input window, operand 0, single buffered']
    #allocation3 [shape = 's32[1]{0}', space=sflag, size = 0x4, scoped, tag = 'scoped memory for tpu_custom_call.1']
    #allocation4 [shape = 's32[1]{0}', space=sflag, size = 0x4, scoped, tag = 'scoped memory for tpu_custom_call.1']
    #allocation5 [shape = 'u8[8192]{0}', space=vmem, size = 0x2000, scoped, tag = 'output window, operand 0, single buffered']
    %7 = vsyncpa [#allocation3], 0
    %8 = vsyncpa [#allocation4], 0
    // Predicated region
    $region2: #{tpu_custom_call.1} parent=1 // pred_check
      _
    $region3: #{tpu_custom_call.1} parent=1 // pred_check_branch
      %10 = sbr.rel (0) target = $region5
    $region4: #{tpu_custom_call.1} parent=1 // pred_region
      %s12 = ssub.s32 256, 256
      %13 = vsyncadd [#allocation3], %s12
      %s14 = sshll.u32 [#allocation2], 4
      %s15 = int_to_ptr.vmem [resolvable:$true] %s14
      %20 = dma.hbm_to_vmem [thread:$0]  %s0, 256, %s15, [#allocation3], 128, 128, 8
    $region5: #{tpu_custom_call.1} parent=1 // pred_fallthru
      _
    // Predicated region
    $region6: #{tpu_custom_call.1} parent=1 // pred_check
      _
    $region7: #{tpu_custom_call.1} parent=1 // pred_check_branch
      %22 = sbr.rel (0) target = $region9
    $region8: #{tpu_custom_call.1} parent=1 // pred_region
      _
    $region9: #{tpu_custom_call.1} parent=1 // pred_fallthru
      _
    // Predicated region
    $region10: #{tpu_custom_call.1} parent=1 // pred_check
      _
    $region11: #{tpu_custom_call.1} parent=1 // pred_check_branch
      %24 = sbr.rel (0) target = $region13
    $region12: #{tpu_custom_call.1} parent=1 // pred_region
      %25 = dma.done [#allocation3], 256
    $region13: #{tpu_custom_call.1} parent=1 // pred_fallthru
      _
    %v26 = vld [vmem:[#allocation2] sm:$0xff]
    %v27 = vld [vmem:[#allocation2 + $0x8] sm:$0xff]
    %v28 = vmul.f32 %v26, %v26
    %v29 = vmul.f32 %v27, %v27
    %30 = vadd.xlane.f32.xlu0 %v28
    %v31 = vpop.xlane.xlu0 %30
    %32 = vadd.xlane.f32.xlu0 %v29
    %v33 = vpop.xlane.xlu0 %32
    %v34 = vmul.f32 %v31, 0.03125
    %v35 = vmul.f32 %v33, 0.03125
    %v36 = vadd.f32 %v34, 1e-06
    %v37 = vadd.f32 %v35, 1e-06
    %v38 = vrsqrt.pop %v36
    %v39 = vrsqrt.pop %v37
    %v40 = vmul.f32 %v26, %v38
    %v41 = vmul.f32 %v27, %v39
    %v42 = vld [vmem:[%s1] sm:$0x1]
    %v44 = vlaneseq
    %v45 = vshrl.u32 %v44, 7
    %v46 = vsub.s32 0, %v45
    %v47 = vrot.slane %v42, %v46
    %v49 = vmul.f32 %v47, %v40
    %v50 = vmul.f32 %v47, %v41
    %51 = vst [vmem:[#allocation5] sm:$0xff] %v49
    %52 = vst [vmem:[#allocation5 + $0x8] sm:$0xff] %v50
    // Predicated region
    $region14: #{tpu_custom_call.1} parent=1 // pred_check
      _
    $region15: #{tpu_custom_call.1} parent=1 // pred_check_branch
      %54 = sbr.rel (0) target = $region17
    $region16: #{tpu_custom_call.1} parent=1 // pred_region
      %s56 = ssub.s32 256, 256
      %57 = vsyncadd [#allocation4], %s56
      %s58 = sshll.u32 [#allocation5], 4
      %s59 = int_to_ptr.vmem [resolvable:$true] %s58
      %64 = dma.vmem_to_hbm [thread:$0]  %s59, 256, %s2, [#allocation4], 128, 128, 8
    $region17: #{tpu_custom_call.1} parent=1 // pred_fallthru
      _
    // Predicated region
    $region18: #{tpu_custom_call.1} parent=1 // pred_check
      _
    $region19: #{tpu_custom_call.1} parent=1 // pred_check_branch
      %66 = sbr.rel (0) target = $region21
    $region20: #{tpu_custom_call.1} parent=1 // pred_region
      %67 = dma.done [#allocation4], 256
    $region21: #{tpu_custom_call.1} parent=1 // pred_fallthru
      _
    %68 = vsyncpa [#allocation3], 1
    %69 = vsyncpa [#allocation4], 1

</llo_original>
